<compile_context>
chip_gen: v7x
topology: tpu7x:2x2x1
jax: 0.10.0
libtpu: 0.0.40
codegen_flags: <defaults>
</compile_context>

<pallas_src>
import jax
import jax.numpy as jnp
from jax.experimental import pallas as pl
from jax.experimental.pallas import tpu as pltpu


def _valuefun_kernel(xT_ref, w1_ref, b1_ref, w2_ref, b2_ref, w3_ref, b3_ref,
                     o_ref):
    xT = xT_ref[...]                       # [obs_dim, TB]   batch on lanes
    w1 = w1_ref[...]                       # [H, obs_dim]
    obs_dim = xT.shape[0]
    H = w1.shape[0]
    TB = xT.shape[1]

    # ---- Layer 1: relu(W1 @ x^T + b1) as obs_dim VPU broadcast-FMAs ----
    acc = jnp.broadcast_to(b1_ref[...], (H, TB))        # [H, TB]
    for k in range(obs_dim):                            # static, tiny (e.g. 4)
        acc = acc + w1[:, k:k + 1] * xT[k:k + 1, :]
    h1 = jnp.maximum(acc, 0.0)                          # [H, TB]

    # ---- Layer 2: relu(W2 @ h1 + b2), 32x32 contraction on the MXU ----
    h2 = jnp.dot(w2_ref[...], h1, preferred_element_type=jnp.float32)
    h2 = jnp.maximum(h2 + b2_ref[...], 0.0)             # [H, TB]

    # ---- Layer 3 (H -> 1): VPU multiply + sublane reduce (no N=1 matmul) ----
    out = jnp.sum(h2 * w3_ref[...], axis=0, keepdims=True)   # [1, TB]
    o_ref[...] = (out + b3_ref[0]).astype(o_ref.dtype)       # lane-dense store


def valuefun_forward(x, params):
    """x: [B, obs_dim] float32 -> [B, 1] float32."""
    w1, b1, w2, b2, w3, b3 = params        # PyTorch layout: w[out, in], b[out]
    B, obs_dim = x.shape
    H = w1.shape[0]

    # Batch tile: largest lane-dense tile up to 512 (well under VMEM limits;
    # leaves headroom for v7x's 64 MiB VMEM while amortizing per-step cost).
    lane = 128
    tile_b = min(512, ((B + lane - 1) // lane) * lane)
    Bp = ((B + tile_b - 1) // tile_b) * tile_b
    grid_b = Bp // tile_b

    # Put batch on the lane axis and pad it to the tile boundary.
    xT = x.T                                             # [obs_dim, B]
    if Bp != B:
        xT = jnp.pad(xT, ((0, 0), (0, Bp - B)))

    b1c = b1.reshape(H, 1)                               # column biases
    b2c = b2.reshape(H, 1)
    w3c = w3.reshape(H, 1)                               # [1, H] -> [H, 1]
    b3v = b3.reshape(1).astype(jnp.float32)              # SMEM scalar

    out = pl.pallas_call(
        _valuefun_kernel,
        out_shape=jax.ShapeDtypeStruct((1, Bp), jnp.float32),
        grid_spec=pl.GridSpec(
            grid=(grid_b,),
            in_specs=[
                pl.BlockSpec((obs_dim, tile_b), lambda i: (0, i)),   # x^T tile
                pl.BlockSpec((H, obs_dim), lambda i: (0, 0)),        # W1
                pl.BlockSpec((H, 1), lambda i: (0, 0)),              # b1
                pl.BlockSpec((H, H), lambda i: (0, 0)),              # W2
                pl.BlockSpec((H, 1), lambda i: (0, 0)),              # b2
                pl.BlockSpec((H, 1), lambda i: (0, 0)),              # w3 column
                pl.BlockSpec(memory_space=pltpu.MemorySpace.SMEM),   # b3 scalar
            ],
            out_specs=pl.BlockSpec((1, tile_b), lambda i: (0, i)),
        ),
        compiler_params=pltpu.CompilerParams(
            dimension_semantics=("parallel",)),
    )(xT, w1, b1c, w2, b2c, w3c, b3v)

    return out[0, :B].reshape(B, 1)


def init_params(obs_dim, hidden=32, key=jax.random.PRNGKey(42)):
    """Deterministic init matching nn.Linear ([out, in] weights, [out] bias)."""
    ks = jax.random.split(key, 6)

    def linear(kw, kb, fan_in, fan_out):
        bound = 1.0 / jnp.sqrt(jnp.float32(fan_in))
        w = jax.random.uniform(kw, (fan_out, fan_in), jnp.float32, -bound, bound)
        b = jax.random.uniform(kb, (fan_out,), jnp.float32, -bound, bound)
        return w, b

    w1, b1 = linear(ks[0], ks[1], obs_dim, hidden)
    w2, b2 = linear(ks[2], ks[3], hidden, hidden)
    w3, b3 = linear(ks[4], ks[5], hidden, 1)
    return (w1, b1, w2, b2, w3, b3)


def valuefun_ref(x, params):
    w1, b1, w2, b2, w3, b3 = params
    hp = jax.lax.Precision.HIGHEST
    h = jnp.maximum(jnp.dot(x, w1.T, precision=hp) + b1, 0.0)
    h = jnp.maximum(jnp.dot(h, w2.T, precision=hp) + b2, 0.0)
    return jnp.dot(h, w3.T, precision=hp) + b3


if __name__ == "__main__":
    obs_dim = 4          # CartPole-like observation space
    hidden = 32

    key = jax.random.PRNGKey(0)
    kx_small, kx_big, kp = jax.random.split(key, 3)
    params = init_params(obs_dim, hidden, key=kp)

    # Production-like tiny batch (single grid step, lane-padded to 128).
    x_small = jax.random.normal(kx_small, (8, obs_dim), dtype=jnp.float32)
    out_small = jax.block_until_ready(valuefun_forward(x_small, params))
    ref_small = valuefun_ref(x_small, params)
    assert out_small.shape == (8, 1), out_small.shape
    assert jnp.allclose(out_small, ref_small, atol=1e-4, rtol=1e-4)

    # Larger batch exercising the batch grid (TILE_B=512 -> 2 grid steps).
    x_big = jax.random.normal(kx_big, (1000, obs_dim), dtype=jnp.float32)
    out_big = jax.block_until_ready(valuefun_forward(x_big, params))
    ref_big = valuefun_ref(x_big, params)
    assert out_big.shape == (1000, 1), out_big.shape
    assert jnp.allclose(out_big, ref_big, atol=1e-4, rtol=1e-4)

    print("KERNEL_OK")
</pallas_src>

<mosaic_0001>
module attributes {stable_mosaic.version = 11 : i64} {
  func.func @_valuefun_kernel(%arg0: i32, %arg1: memref<4x128xf32, #tpu.memory_space<vmem>>, %arg2: memref<32x4xf32, #tpu.memory_space<vmem>>, %arg3: memref<32x1xf32, #tpu.memory_space<vmem>>, %arg4: memref<32x32xf32, #tpu.memory_space<vmem>>, %arg5: memref<32x1xf32, #tpu.memory_space<vmem>>, %arg6: memref<32x1xf32, #tpu.memory_space<vmem>>, %arg7: memref<1xf32, #tpu.memory_space<smem>>, %arg8: memref<1x128xf32, #tpu.memory_space<vmem>>) attributes {dimension_semantics = [#tpu.dimension_semantics<parallel>], iteration_bounds = array<i64: 1>, scalar_prefetch = 0 : i64, scratch_operands = 0 : i64, tpu.core_type = #tpu.core_type<tc>, window_params = [{transform_indices = @transform_0, window_bounds = array<i64: 4, 128>}, {pipeline_mode = #tpu.pipeline_mode<synchronous>, transform_indices = @transform_1, window_bounds = array<i64: 32, 4>}, {pipeline_mode = #tpu.pipeline_mode<synchronous>, transform_indices = @transform_2, window_bounds = array<i64: 32, 1>}, {pipeline_mode = #tpu.pipeline_mode<synchronous>, transform_indices = @transform_3, window_bounds = array<i64: 32, 32>}, {pipeline_mode = #tpu.pipeline_mode<synchronous>, transform_indices = @transform_4, window_bounds = array<i64: 32, 1>}, {pipeline_mode = #tpu.pipeline_mode<synchronous>, transform_indices = @transform_5, window_bounds = array<i64: 32, 1>}, {transform_indices = @transform_6, window_bounds = array<i64: 1>}, {transform_indices = @transform_7, window_bounds = array<i64: 1, 128>}]} {
    %c0 = arith.constant 0 : index
    %c0_0 = arith.constant 0 : index
    %0 = vector.load %arg1[%c0, %c0_0] : memref<4x128xf32, #tpu.memory_space<vmem>>, vector<4x128xf32>
    %c0_1 = arith.constant 0 : index
    %c0_2 = arith.constant 0 : index
    %1 = vector.load %arg2[%c0_1, %c0_2] : memref<32x4xf32, #tpu.memory_space<vmem>>, vector<32x4xf32>
    %c0_3 = arith.constant 0 : index
    %c0_4 = arith.constant 0 : index
    %2 = vector.load %arg3[%c0_3, %c0_4] : memref<32x1xf32, #tpu.memory_space<vmem>>, vector<32x1xf32>
    %3 = vector.shape_cast %2 : vector<32x1xf32> to vector<32x1xf32>
    %4 = vector.broadcast %3 : vector<32x1xf32> to vector<32x128xf32>
    %5 = vector.extract_strided_slice %1 {offsets = [0, 0], sizes = [32, 1], strides = [1, 1]} : vector<32x4xf32> to vector<32x1xf32>
    %6 = vector.extract_strided_slice %0 {offsets = [0, 0], sizes = [1, 128], strides = [1, 1]} : vector<4x128xf32> to vector<1x128xf32>
    %7 = vector.broadcast %5 : vector<32x1xf32> to vector<32x128xf32>
    %8 = vector.broadcast %6 : vector<1x128xf32> to vector<32x128xf32>
    %9 = arith.mulf %7, %8 : vector<32x128xf32>
    %10 = arith.addf %4, %9 : vector<32x128xf32>
    %11 = vector.extract_strided_slice %1 {offsets = [0, 1], sizes = [32, 1], strides = [1, 1]} : vector<32x4xf32> to vector<32x1xf32>
    %12 = vector.extract_strided_slice %0 {offsets = [1, 0], sizes = [1, 128], strides = [1, 1]} : vector<4x128xf32> to vector<1x128xf32>
    %13 = vector.broadcast %11 : vector<32x1xf32> to vector<32x128xf32>
    %14 = vector.broadcast %12 : vector<1x128xf32> to vector<32x128xf32>
    %15 = arith.mulf %13, %14 : vector<32x128xf32>
    %16 = arith.addf %10, %15 : vector<32x128xf32>
    %17 = vector.extract_strided_slice %1 {offsets = [0, 2], sizes = [32, 1], strides = [1, 1]} : vector<32x4xf32> to vector<32x1xf32>
    %18 = vector.extract_strided_slice %0 {offsets = [2, 0], sizes = [1, 128], strides = [1, 1]} : vector<4x128xf32> to vector<1x128xf32>
    %19 = vector.broadcast %17 : vector<32x1xf32> to vector<32x128xf32>
    %20 = vector.broadcast %18 : vector<1x128xf32> to vector<32x128xf32>
    %21 = arith.mulf %19, %20 : vector<32x128xf32>
    %22 = arith.addf %16, %21 : vector<32x128xf32>
    %23 = vector.extract_strided_slice %1 {offsets = [0, 3], sizes = [32, 1], strides = [1, 1]} : vector<32x4xf32> to vector<32x1xf32>
    %24 = vector.extract_strided_slice %0 {offsets = [3, 0], sizes = [1, 128], strides = [1, 1]} : vector<4x128xf32> to vector<1x128xf32>
    %25 = vector.broadcast %23 : vector<32x1xf32> to vector<32x128xf32>
    %26 = vector.broadcast %24 : vector<1x128xf32> to vector<32x128xf32>
    %27 = arith.mulf %25, %26 : vector<32x128xf32>
    %28 = arith.addf %22, %27 : vector<32x128xf32>
    %cst = arith.constant 0.000000e+00 : f32
    %29 = vector.broadcast %cst : f32 to vector<32x128xf32>
    %30 = arith.maximumf %28, %29 : vector<32x128xf32>
    %c0_5 = arith.constant 0 : index
    %c0_6 = arith.constant 0 : index
    %31 = vector.load %arg4[%c0_5, %c0_6] : memref<32x32xf32, #tpu.memory_space<vmem>>, vector<32x32xf32>
    %cst_7 = arith.constant dense<0.000000e+00> : vector<32x128xf32>
    %32 = tpu.matmul %31, %30, %cst_7 {dimension_numbers = #tpu.dot_dimension_numbers<[1], [0], [0], [1], [0, 0, 1, 1], [], []>} : vector<32x32xf32>, vector<32x128xf32>, vector<32x128xf32> -> vector<32x128xf32>
    %c0_8 = arith.constant 0 : index
    %c0_9 = arith.constant 0 : index
    %33 = vector.load %arg5[%c0_8, %c0_9] : memref<32x1xf32, #tpu.memory_space<vmem>>, vector<32x1xf32>
    %34 = vector.broadcast %33 : vector<32x1xf32> to vector<32x128xf32>
    %35 = arith.addf %32, %34 : vector<32x128xf32>
    %cst_10 = arith.constant 0.000000e+00 : f32
    %36 = vector.broadcast %cst_10 : f32 to vector<32x128xf32>
    %37 = arith.maximumf %35, %36 : vector<32x128xf32>
    %c0_11 = arith.constant 0 : index
    %c0_12 = arith.constant 0 : index
    %38 = vector.load %arg6[%c0_11, %c0_12] : memref<32x1xf32, #tpu.memory_space<vmem>>, vector<32x1xf32>
    %39 = vector.broadcast %38 : vector<32x1xf32> to vector<32x128xf32>
    %40 = arith.mulf %37, %39 : vector<32x128xf32>
    %cst_13 = arith.constant dense<0.000000e+00> : vector<128xf32>
    %41 = vector.multi_reduction <add>, %40, %cst_13 [0] : vector<32x128xf32> to vector<128xf32>
    %42 = vector.shape_cast %41 : vector<128xf32> to vector<1x128xf32>
    %c0_14 = arith.constant 0 : index
    %43 = memref.load %arg7[%c0_14] : memref<1xf32, #tpu.memory_space<smem>>
    %44 = vector.broadcast %43 : f32 to vector<1x128xf32>
    %45 = arith.addf %42, %44 : vector<1x128xf32>
    %c0_15 = arith.constant 0 : index
    %c0_16 = arith.constant 0 : index
    %46 = vector.load %arg8[%c0_15, %c0_16] : memref<1x128xf32, #tpu.memory_space<vmem>>, vector<1x128xf32>
    tpu.vector_store %arg8[%c0_15, %c0_16], %45 {strides = array<i32>} : memref<1x128xf32, #tpu.memory_space<vmem>>, vector<1x128xf32>,
    return
  }
  func.func @transform_0(%arg0: i32) -> (i32, i32) {
    %c0_i32 = arith.constant 0 : i32
    %c0_i32_0 = arith.constant 0 : i32
    return %c0_i32, %arg0 : i32, i32
  }
  func.func @transform_1(%arg0: i32) -> (i32, i32) {
    %c0_i32 = arith.constant 0 : i32
    %c0_i32_0 = arith.constant 0 : i32
    %c0_i32_1 = arith.constant 0 : i32
    return %c0_i32, %c0_i32_0 : i32, i32
  }
  func.func @transform_2(%arg0: i32) -> (i32, i32) {
    %c0_i32 = arith.constant 0 : i32
    %c0_i32_0 = arith.constant 0 : i32
    %c0_i32_1 = arith.constant 0 : i32
    return %c0_i32, %c0_i32_0 : i32, i32
  }
  func.func @transform_3(%arg0: i32) -> (i32, i32) {
    %c0_i32 = arith.constant 0 : i32
    %c0_i32_0 = arith.constant 0 : i32
    %c0_i32_1 = arith.constant 0 : i32
    return %c0_i32, %c0_i32_0 : i32, i32
  }
  func.func @transform_4(%arg0: i32) -> (i32, i32) {
    %c0_i32 = arith.constant 0 : i32
    %c0_i32_0 = arith.constant 0 : i32
    %c0_i32_1 = arith.constant 0 : i32
    return %c0_i32, %c0_i32_0 : i32, i32
  }
  func.func @transform_5(%arg0: i32) -> (i32, i32) {
    %c0_i32 = arith.constant 0 : i32
    %c0_i32_0 = arith.constant 0 : i32
    %c0_i32_1 = arith.constant 0 : i32
    return %c0_i32, %c0_i32_0 : i32, i32
  }
  func.func @transform_6(%arg0: i32) -> i32 {
    %c0_i32 = arith.constant 0 : i32
    %c0_i32_0 = arith.constant 0 : i32
    return %c0_i32 : i32
  }
  func.func @transform_7(%arg0: i32) -> (i32, i32) {
    %c0_i32 = arith.constant 0 : i32
    %c0_i32_0 = arith.constant 0 : i32
    return %c0_i32, %arg0 : i32, i32
  }
}

</mosaic_0001>

<llo_original>
// kernel: tpu_custom_call.1
$region0: #{tpu_custom_call.1}
  #allocation0 [shape = 'u32[]', space=smem, size = 0x4, offset = 0x4, fixed_abs, tag = 'smem constant byte address 0x4 - core index']
  #allocation1 [shape = 'u32[144,128]{1,0:T(1,128)}', space=vmem, size = 0x12000, scoped, tag = 'internal scratch']
  #allocation2 [shape = 'f32[1]{0:T(128)S(6)}', space=smem, size = 0x200, scoped, tag = 'scoped memory for tpu_custom_call.1']
  %s0 = inlined_call_operand.vmem [shape: f32[4,128], index: 0, kind: input, shape index: {}]
  %s1 = inlined_call_operand.vmem [shape: f32[32,4], index: 1, kind: input, shape index: {}]
  %s2 = inlined_call_operand.vmem [shape: f32[32,1], index: 2, kind: input, shape index: {}]
  %s3 = inlined_call_operand.vmem [shape: f32[32,32], index: 3, kind: input, shape index: {}]
  %s4 = inlined_call_operand.vmem [shape: f32[32,1], index: 4, kind: input, shape index: {}]
  %s5 = inlined_call_operand.vmem [shape: f32[32,1], index: 5, kind: input, shape index: {}]
  %s6 = inlined_call_operand.<no memory space> [shape: f32[1], index: 6, kind: input, shape index: {}]
  %s7 = inlined_call_operand.hbm [shape: f32[1,128], index: 7, kind: output, shape index: {}]
  %s8 = sld [smem:[#allocation0]]
  $region38: #{tpu_custom_call.1} parent=0
    _
  %s10 = ssub.s32 1, %s8
  %s11 = scalar_select 0, %s10, %s8
  %12 = sst [smem:[#allocation2]] %s6
  $region1: #{tpu_custom_call.1} parent=0
    #allocation3 [shape = 'u8[512]{0}', space=vmem, size = 0x400, scoped, tag = 'output window, operand 0, single buffered']
    #allocation4 [shape = 's32[1]{0}', space=sflag, size = 0x4, scoped, tag = 'scoped memory for tpu_custom_call.1']
    %13 = vsyncpa [#allocation4], 0
    // Predicated region
    $region2: #{tpu_custom_call.1} parent=1 // pred_check
      _
    $region3: #{tpu_custom_call.1} parent=1 // pred_check_branch
      %15 = sbr.rel (0) target = $region5
    $region4: #{tpu_custom_call.1} parent=1 // pred_region
      _
    $region5: #{tpu_custom_call.1} parent=1 // pred_fallthru
      _
    // Predicated region
    $region6: #{tpu_custom_call.1} parent=1 // pred_check
      _
    $region7: #{tpu_custom_call.1} parent=1 // pred_check_branch
      %17 = sbr.rel (0) target = $region9
    $region8: #{tpu_custom_call.1} parent=1 // pred_region
      _
    $region9: #{tpu_custom_call.1} parent=1 // pred_fallthru
      _
    // Predicated region
    $region10: #{tpu_custom_call.1} parent=1 // pred_check
      _
    $region11: #{tpu_custom_call.1} parent=1 // pred_check_branch
      %19 = sbr.rel (0) target = $region13
    $region12: #{tpu_custom_call.1} parent=1 // pred_region
      _
    $region13: #{tpu_custom_call.1} parent=1 // pred_fallthru
      _
    // Predicated region
    $region14: #{tpu_custom_call.1} parent=1 // pred_check
      _
    $region15: #{tpu_custom_call.1} parent=1 // pred_check_branch
      %21 = sbr.rel (0) target = $region17
    $region16: #{tpu_custom_call.1} parent=1 // pred_region
      _
    $region17: #{tpu_custom_call.1} parent=1 // pred_fallthru
      _
    // Predicated region
    $region18: #{tpu_custom_call.1} parent=1 // pred_check
      _
    $region19: #{tpu_custom_call.1} parent=1 // pred_check_branch
      %23 = sbr.rel (0) target = $region21
    $region20: #{tpu_custom_call.1} parent=1 // pred_region
      _
    $region21: #{tpu_custom_call.1} parent=1 // pred_fallthru
      _
    // Predicated region
    $region22: #{tpu_custom_call.1} parent=1 // pred_check
      _
    $region23: #{tpu_custom_call.1} parent=1 // pred_check_branch
      %25 = sbr.rel (0) target = $region25
    $region24: #{tpu_custom_call.1} parent=1 // pred_region
      _
    $region25: #{tpu_custom_call.1} parent=1 // pred_fallthru
      _
    // Predicated region
    $region26: #{tpu_custom_call.1} parent=1 // pred_check
      _
    $region27: #{tpu_custom_call.1} parent=1 // pred_check_branch
      %27 = sbr.rel (0) target = $region29
    $region28: #{tpu_custom_call.1} parent=1 // pred_region
      _
    $region29: #{tpu_custom_call.1} parent=1 // pred_fallthru
      _
    %v28 = vld [vmem:[%s0] sm:$0xf]
    %v29 = vld [vmem:[%s1] sm:$0xff]
    %v30 = vld [vmem:[%s1 + $0x8] sm:$0xff]
    %v31 = vld [vmem:[%s1 + $0x10] sm:$0xff]
    %v32 = vld [vmem:[%s1 + $0x18] sm:$0xff]
    %v33 = vld [vmem:[%s2] sm:$0xff]
    %v34 = vld [vmem:[%s2 + $0x8] sm:$0xff]
    %v35 = vld [vmem:[%s2 + $0x10] sm:$0xff]
    %v36 = vld [vmem:[%s2 + $0x18] sm:$0xff]
    %38 = vset.pattern.permute.xlu0 0
    %39 = vperm.xlu0 %38, %v33
    %v40 = vpop.permute.xlu0 %39
    %43 = vset.pattern.permute.xlu0 0
    %44 = vperm.xlu0 %43, %v34
    %v45 = vpop.permute.xlu0 %44
    %48 = vset.pattern.permute.xlu0 0
    %49 = vperm.xlu0 %48, %v35
    %v50 = vpop.permute.xlu0 %49
    %53 = vset.pattern.permute.xlu0 0
    %54 = vperm.xlu0 %53, %v36
    %v55 = vpop.permute.xlu0 %54
    %58 = vset.pattern.permute.xlu0 0
    %59 = vperm.xlu0 %58, %v29
    %v60 = vpop.permute.xlu0 %59
    %63 = vset.pattern.permute.xlu0 0
    %64 = vperm.xlu0 %63, %v30
    %v65 = vpop.permute.xlu0 %64
    %68 = vset.pattern.permute.xlu0 0
    %69 = vperm.xlu0 %68, %v31
    %v70 = vpop.permute.xlu0 %69
    %73 = vset.pattern.permute.xlu0 0
    %74 = vperm.xlu0 %73, %v32
    %v75 = vpop.permute.xlu0 %74
    %v77 = vlaneseq
    %v78 = vshrl.u32 %v77, 7
    %v79 = vsub.s32 0, %v78
    %v80 = vrot.slane %v28, %v79
    %v81 = vmul.f32 %v60, %v80
    %v82 = vmul.f32 %v65, %v80
    %v83 = vmul.f32 %v70, %v80
    %v84 = vmul.f32 %v75, %v80
    %v85 = vadd.f32 %v40, %v81
    %v86 = vadd.f32 %v45, %v82
    %v87 = vadd.f32 %v50, %v83
    %v88 = vadd.f32 %v55, %v84
    %89 = vset.pattern.permute.xlu0 1
    %90 = vperm.xlu0 %89, %v29
    %v91 = vpop.permute.xlu0 %90
    %93 = vset.pattern.permute.xlu0 1
    %94 = vperm.xlu0 %93, %v30
    %v95 = vpop.permute.xlu0 %94
    %97 = vset.pattern.permute.xlu0 1
    %98 = vperm.xlu0 %97, %v31
    %v99 = vpop.permute.xlu0 %98
    %101 = vset.pattern.permute.xlu0 1
    %102 = vperm.xlu0 %101, %v32
    %v103 = vpop.permute.xlu0 %102
    %v105 = vlaneseq
    %v106 = vshrl.u32 %v105, 7
    %v107 = vsub.s32 1, %v106
    %v108 = vrot.slane %v28, %v107
    %v109 = vmul.f32 %v91, %v108
    %v110 = vmul.f32 %v95, %v108
    %v111 = vmul.f32 %v99, %v108
    %v112 = vmul.f32 %v103, %v108
    %v113 = vadd.f32 %v85, %v109
    %v114 = vadd.f32 %v86, %v110
    %v115 = vadd.f32 %v87, %v111
    %v116 = vadd.f32 %v88, %v112
    %117 = vset.pattern.permute.xlu0 2
    %118 = vperm.xlu0 %117, %v29
    %v119 = vpop.permute.xlu0 %118
    %121 = vset.pattern.permute.xlu0 2
    %122 = vperm.xlu0 %121, %v30
    %v123 = vpop.permute.xlu0 %122
    %125 = vset.pattern.permute.xlu0 2
    %126 = vperm.xlu0 %125, %v31
    %v127 = vpop.permute.xlu0 %126
    %129 = vset.pattern.permute.xlu0 2
    %130 = vperm.xlu0 %129, %v32
    %v131 = vpop.permute.xlu0 %130
    %v133 = vlaneseq
    %v134 = vshrl.u32 %v133, 7
    %v135 = vsub.s32 2, %v134
    %v136 = vrot.slane %v28, %v135
    %v137 = vmul.f32 %v119, %v136
    %v138 = vmul.f32 %v123, %v136
    %v139 = vmul.f32 %v127, %v136
    %v140 = vmul.f32 %v131, %v136
    %v141 = vadd.f32 %v113, %v137
    %v142 = vadd.f32 %v114, %v138
    %v143 = vadd.f32 %v115, %v139
    %v144 = vadd.f32 %v116, %v140
    %145 = vset.pattern.permute.xlu0 3
    %146 = vperm.xlu0 %145, %v29
    %v147 = vpop.permute.xlu0 %146
    %149 = vset.pattern.permute.xlu0 3
    %150 = vperm.xlu0 %149, %v30
    %v151 = vpop.permute.xlu0 %150
    %153 = vset.pattern.permute.xlu0 3
    %154 = vperm.xlu0 %153, %v31
    %v155 = vpop.permute.xlu0 %154
    %157 = vset.pattern.permute.xlu0 3
    %158 = vperm.xlu0 %157, %v32
    %v159 = vpop.permute.xlu0 %158
    %v161 = vlaneseq
    %v162 = vshrl.u32 %v161, 7
    %v163 = vsub.s32 3, %v162
    %v164 = vrot.slane %v28, %v163
    %v165 = vmul.f32 %v147, %v164
    %v166 = vmul.f32 %v151, %v164
    %v167 = vmul.f32 %v155, %v164
    %v168 = vmul.f32 %v159, %v164
    %v169 = vadd.f32 %v141, %v165
    %v170 = vadd.f32 %v142, %v166
    %v171 = vadd.f32 %v143, %v167
    %v172 = vadd.f32 %v144, %v168
    %v173 = vmax.f32 %v169, 0.0
    %v174 = vmax.f32 %v170, 0.0
    %v175 = vmax.f32 %v171, 0.0
    %v176 = vmax.f32 %v172, 0.0
    %v177 = vld [vmem:[%s3] sm:$0xff]
    %v178 = vld [vmem:[%s3 + $0x8] sm:$0xff]
    %v179 = vld [vmem:[%s3 + $0x10] sm:$0xff]
    %v180 = vld [vmem:[%s3 + $0x18] sm:$0xff]
    %v181 = vld [vmem:[%s4] sm:$0xff]
    %v182 = vld [vmem:[%s4 + $0x8] sm:$0xff]
    %v183 = vld [vmem:[%s4 + $0x10] sm:$0xff]
    %v184 = vld [vmem:[%s4 + $0x18] sm:$0xff]
    %186 = vset.pattern.permute.xlu0 0
    %187 = vperm.xlu0 %186, %v181
    %v188 = vpop.permute.xlu0 %187
    %191 = vset.pattern.permute.xlu0 0
    %192 = vperm.xlu0 %191, %v182
    %v193 = vpop.permute.xlu0 %192
    %196 = vset.pattern.permute.xlu0 0
    %197 = vperm.xlu0 %196, %v183
    %v198 = vpop.permute.xlu0 %197
    %201 = vset.pattern.permute.xlu0 0
    %202 = vperm.xlu0 %201, %v184
    %v203 = vpop.permute.xlu0 %202
    %vm205 = vcmask 261120
    %v207 = vsel %vm205, %v177, 0
    %v210 = vsel %vm205, %v178, 0
    %v213 = vsel %vm205, %v179, 0
    %v216 = vsel %vm205, %v180, 0
    %218 = vmatprep.subr.mxu0 0.0
    %219 = vmatpush1.msra.mxu0 %v173
    %220 = vmatprep.subr.mxu0 0.0
    %221 = vmatpush1.msra.mxu0 %v174
    %222 = vmatprep.subr.mxu0 0.0
    %223 = vmatpush1.msra.mxu0 %v175
    %224 = vmatprep.subr.mxu0 0.0
    %225 = vmatpush1.msra.mxu0 %v176
    %226 = vmatprep.subr.mxu0 0.0
    %227 = vmatpush1.msra.mxu0 0.0
    %228 = vmatprep.subr.mxu0 0.0
    %229 = vmatpush1.msra.mxu0 0.0
    %230 = vmatprep.subr.mxu0 0.0
    %231 = vmatpush1.msra.mxu0 0.0
    %232 = vmatprep.subr.mxu0 0.0
    %233 = vmatpush1.msra.mxu0 0.0
    %234 = vmatprep.subr.mxu0 0.0
    %235 = vmatpush1.msra.mxu0 0.0
    %236 = vmatprep.subr.mxu0 0.0
    %237 = vmatpush1.msra.mxu0 0.0
    %238 = vmatprep.subr.mxu0 0.0
    %239 = vmatpush1.msra.mxu0 0.0
    %240 = vmatprep.subr.mxu0 0.0
    %241 = vmatpush1.msra.mxu0 0.0
    %242 = vmatprep.subr.mxu0 0.0
    %243 = vmatpush1.msra.mxu0 0.0
    %244 = vmatprep.subr.mxu0 0.0
    %245 = vmatpush1.msra.mxu0 0.0
    %246 = vmatprep.subr.mxu0 0.0
    %247 = vmatpush1.msra.mxu0 0.0
    %248 = vmatprep.subr.mxu0 0.0
    %249 = vmatpush1.msra.mxu0 0.0
    %250 = vmatprep.subr.mxu0 0.0
    %251 = vmatpush1.msra.mxu0 0.0
    %252 = vmatprep.subr.mxu0 0.0
    %253 = vmatpush1.msra.mxu0 0.0
    %254 = vmatprep.subr.mxu0 0.0
    %255 = vmatpush1.msra.mxu0 0.0
    %256 = vmatprep.subr.mxu0 0.0
    %257 = vmatpush1.msra.mxu0 0.0
    %258 = vmatprep.subr.mxu0 0.0
    %259 = vmatpush1.msra.mxu0 0.0
    %260 = vmatprep.subr.mxu0 0.0
    %261 = vmatpush1.msra.mxu0 0.0
    %262 = vmatprep.subr.mxu0 0.0
    %263 = vmatpush1.msra.mxu0 0.0
    %264 = vmatprep.subr.mxu0 0.0
    %265 = vmatpush1.msra.mxu0 0.0
    %266 = vmatprep.subr.mxu0 0.0
    %267 = vmatpush1.msra.mxu0 0.0
    %268 = vmatprep.subr.mxu0 0.0
    %269 = vmatpush1.msra.mxu0 0.0
    %270 = vmatprep.subr.mxu0 0.0
    %271 = vmatpush1.msra.mxu0 0.0
    %272 = vmatprep.subr.mxu0 0.0
    %273 = vmatpush1.msra.mxu0 0.0
    %274 = vmatprep.subr.mxu0 0.0
    %275 = vmatpush1.msra.mxu0 0.0
    %276 = vmatprep.subr.mxu0 0.0
    %277 = vmatpush1.msra.mxu0 0.0
    %278 = vmatprep.subr.mxu0 0.0
    %279 = vmatpush1.msra.mxu0 0.0
    %280 = vmatprep.subr.mxu0 0.0
    %281 = vmatpush1.msra.mxu0 0.0
    %282 = vmatprep.mubr.f32.mxu0 0.0
    %283 = vmatmul.mubr.f32.gmra.mrb[0].mxu0 %v207
    %v284 = vpop.f32.mrb[0].mxu0
    %v285 = vadd.f32 %v188, %v284
    %v286 = vpop.f32.mrb[0].mxu0
    %287 = vmatprep.mubr.f32.mxu0 0.0
    %288 = vmatmul.mubr.f32.gmra.mrb[0].mxu0 %v210
    %v289 = vpop.f32.mrb[0].mxu0
    %v290 = vadd.f32 %v193, %v289
    %v291 = vpop.f32.mrb[0].mxu0
    %292 = vmatprep.mubr.f32.mxu0 0.0
    %293 = vmatmul.mubr.f32.gmra.mrb[0].mxu0 %v213
    %v294 = vpop.f32.mrb[0].mxu0
    %v295 = vadd.f32 %v198, %v294
    %v296 = vpop.f32.mrb[0].mxu0
    %297 = vmatprep.mubr.f32.mxu0 0.0
    %298 = vmatmul.mubr.f32.gmra.mrb[0].mxu0 %v216
    %v299 = vpop.f32.mrb[0].mxu0
    %v300 = vadd.f32 %v203, %v299
    %v301 = vpop.f32.mrb[0].mxu0
    %302 = vdwg.mxu0
    %v303 = vmax.f32 %v285, 0.0
    %v304 = vmax.f32 %v290, 0.0
    %v305 = vmax.f32 %v295, 0.0
    %v306 = vmax.f32 %v300, 0.0
    %v307 = vld [vmem:[%s5] sm:$0xff]
    %v308 = vld [vmem:[%s5 + $0x8] sm:$0xff]
    %v309 = vld [vmem:[%s5 + $0x10] sm:$0xff]
    %v310 = vld [vmem:[%s5 + $0x18] sm:$0xff]
    %312 = vset.pattern.permute.xlu0 0
    %313 = vperm.xlu0 %312, %v307
    %v314 = vpop.permute.xlu0 %313
    %317 = vset.pattern.permute.xlu0 0
    %318 = vperm.xlu0 %317, %v308
    %v319 = vpop.permute.xlu0 %318
    %322 = vset.pattern.permute.xlu0 0
    %323 = vperm.xlu0 %322, %v309
    %v324 = vpop.permute.xlu0 %323
    %327 = vset.pattern.permute.xlu0 0
    %328 = vperm.xlu0 %327, %v310
    %v329 = vpop.permute.xlu0 %328
    %v331 = vmul.f32 %v303, %v314
    %v332 = vmul.f32 %v304, %v319
    %v333 = vmul.f32 %v305, %v324
    %v334 = vmul.f32 %v306, %v329
    %v335 = vadd.f32 %v331, %v332
    %v336 = vadd.f32 %v335, %v333
    %v337 = vadd.f32 %v336, %v334
    %v338 = vrot.slane %v337, 4
    %v339 = vadd.f32 %v337, %v338
    %v340 = vrot.slane %v339, 2
    %v341 = vadd.f32 %v339, %v340
    %v342 = vrot.slane %v341, 1
    %v343 = vadd.f32 %v341, %v342
    %s344 = sld [smem:[#allocation2]]
    %v345 = vstv %s344
    %v346 = vadd.f32 %v343, %v345
    %347 = vst [vmem:[#allocation3] sm:$0x1] %v346
    // Predicated region
    $region30: #{tpu_custom_call.1} parent=1 // pred_check
      _
    $region31: #{tpu_custom_call.1} parent=1 // pred_check_branch
      %349 = sbr.rel (0) target = $region33
    $region32: #{tpu_custom_call.1} parent=1 // pred_region
      %s351 = ssub.s32 16, 16
      %352 = vsyncadd [#allocation4], %s351
      %s354 = sshll.u32 [#allocation3], 4
      %s355 = int_to_ptr.vmem [resolvable:$true] %s354
      %357 = dma.vmem_to_hbm [thread:$0]  %s355, 16, %s7, [#allocation4]
    $region33: #{tpu_custom_call.1} parent=1 // pred_fallthru
      _
    // Predicated region
    $region34: #{tpu_custom_call.1} parent=1 // pred_check
      _
    $region35: #{tpu_custom_call.1} parent=1 // pred_check_branch
      %359 = sbr.rel (0) target = $region37
    $region36: #{tpu_custom_call.1} parent=1 // pred_region
      %360 = dma.done [#allocation4], 16
    $region37: #{tpu_custom_call.1} parent=1 // pred_fallthru
      _
    %361 = vsyncpa [#allocation4], 1

</llo_original>
